<compile_context>
chip_gen: v7x
topology: tpu7x:2x2x1
jax: 0.10.0
libtpu: 0.0.40
codegen_flags: <defaults>
</compile_context>

<pallas_src>
import jax
import jax.numpy as jnp
from jax.experimental import pallas as pl
from jax.experimental.pallas import tpu as pltpu


def _round_up(x, m):
    return ((x + m - 1) // m) * m


_TARGET_TILE_BYTES = 1 << 20   # ~1 MiB of input-dtype data per block
_MAX_ROW_TILE = 2048           # bound sublane extent / param-block VMEM
_VMEM_LIMIT_BYTES = 32 << 20   # moderate scoped limit; kernel is HBM-bound


def _make_instance_norm_kernel(hw):
    inv_n = 1.0 / float(hw)

    def kernel(x_ref, w_ref, b_ref, o_ref):
        # x_ref / o_ref : (row_tile, HW) tiles
        # w_ref / b_ref : (row_tile, 1) per-row affine params (f32)
        x = x_ref[...].astype(jnp.float32)

        # Two-pass (numerically stable) mean / biased variance (unbiased=False).
        mu = jnp.sum(x, axis=-1, keepdims=True) * inv_n
        xc = x - mu
        var = jnp.sum(xc * xc, axis=-1, keepdims=True) * inv_n
        inv = jax.lax.rsqrt(var + 1e-05)

        # Fold the affine into a per-row scale/shift so the normalize pass is
        # a single multiply-add per element.
        scale = inv * w_ref[...]
        shift = b_ref[...] - mu * scale
        o_ref[...] = (x * scale + shift).astype(o_ref.dtype)

    return kernel


def instance_norm(x, weight, bias, *, donate_input=False):
    """x: (N, C, H, W); weight/bias: (1, C, 1, 1) — PyTorch InstanceNorm semantics."""
    N, C, H, W = x.shape
    NC, HW = N * C, H * W
    itemsize = jnp.dtype(x.dtype).itemsize

    # Row tile sized for HBM-bandwidth saturation (~1 MiB of input data), not
    # as a VMEM fraction; deeper grid => real double-buffering on every chip.
    nc_pad8 = _round_up(NC, 8)
    row_tile = max(8, (_TARGET_TILE_BYTES // max(1, HW * itemsize)) // 8 * 8)
    row_tile = min(row_tile, _MAX_ROW_TILE, nc_pad8)
    # Keep >= 8 grid steps when NC allows (>= 4 per TensorCore on v7x) so the
    # prologue/epilogue DMAs stay hidden and both cores get work.
    if nc_pad8 >= 8 * 8:
        row_tile = min(row_tile, max(8, _round_up(pl.cdiv(nc_pad8, 8), 8)))
    # TODO(synk): if HW is so large that even an 8-row tile exceeds VMEM, add a
    # second "arbitrary" grid axis over HW with scratch sum / sum-of-squares
    # accumulators and a pl.when finalize.

    num_blocks = pl.cdiv(NC, row_tile)

    # Pure metadata reshape (contiguous NCHW): no HBM traffic.
    x2 = x.reshape(NC, HW)

    # Per-row affine params (channel -> N*C rows), f32, streamed per block.
    # Note: the last (partial) grid block may read rows past NC; those rows'
    # outputs fall outside (NC, HW) and are dropped — harmless for this
    # per-row-independent computation.
    w_row = jnp.broadcast_to(weight.reshape(1, C), (N, C)).reshape(NC, 1).astype(jnp.float32)
    b_row = jnp.broadcast_to(bias.reshape(1, C), (N, C)).reshape(NC, 1).astype(jnp.float32)

    kernel = _make_instance_norm_kernel(HW)

    out = pl.pallas_call(
        kernel,
        out_shape=jax.ShapeDtypeStruct((NC, HW), x.dtype),
        grid_spec=pltpu.PrefetchScalarGridSpec(
            num_scalar_prefetch=0,
            grid=(num_blocks,),
            in_specs=[
                # Full-extent last block dim (== HW): no HBM padding copy and
                # no output crop even when HW % 128 != 0.
                pl.BlockSpec((row_tile, HW), lambda i: (i, 0)),
                pl.BlockSpec((row_tile, 1), lambda i: (i, 0)),
                pl.BlockSpec((row_tile, 1), lambda i: (i, 0)),
            ],
            out_specs=pl.BlockSpec((row_tile, HW), lambda i: (i, 0)),
        ),
        compiler_params=pltpu.CompilerParams(
            dimension_semantics=("parallel",),
            vmem_limit_bytes=_VMEM_LIMIT_BYTES,
        ),
        # Capacity-only optimization: reuse x's HBM buffer for the output when
        # the caller no longer needs x.
        input_output_aliases=({0: 0} if donate_input else {}),
    )(x2, w_row, b_row)

    return out.reshape(N, C, H, W)


def instance_norm_ref(x, weight, bias):
    mu = jnp.mean(x, axis=(2, 3), keepdims=True)
    sigma = jnp.var(x, axis=(2, 3), keepdims=True)
    return (x - mu) / jnp.sqrt(sigma + 1e-05) * weight + bias


if __name__ == "__main__":
    key = jax.random.PRNGKey(0)
    N, C, H, W = 2, 4, 16, 16
    x = jax.random.normal(key, (N, C, H, W), dtype=jnp.float32)

    # deterministic params, matching nn.Parameter(torch.ones/zeros((1, C, 1, 1)))
    weight = jnp.ones((1, C, 1, 1), dtype=jnp.float32)
    bias = jnp.zeros((1, C, 1, 1), dtype=jnp.float32)

    y = instance_norm(x, weight, bias)
    jax.block_until_ready(y)

    y_ref = instance_norm_ref(x, weight, bias)
    assert jnp.allclose(y, y_ref, atol=1e-4, rtol=1e-4), "mismatch vs reference"

    print("KERNEL_OK")
</pallas_src>

<mosaic_0001>
module attributes {stable_mosaic.version = 11 : i64} {
  func.func @kernel(%arg0: i32, %arg1: memref<8x256xf32, #tpu.memory_space<vmem>>, %arg2: memref<8x1xf32, #tpu.memory_space<vmem>>, %arg3: memref<8x1xf32, #tpu.memory_space<vmem>>, %arg4: memref<8x256xf32, #tpu.memory_space<vmem>>) attributes {dimension_semantics = [#tpu.dimension_semantics<parallel>], iteration_bounds = array<i64: 1>, scalar_prefetch = 0 : i64, scratch_operands = 0 : i64, tpu.core_type = #tpu.core_type<tc>, window_params = [{transform_indices = @transform_0, window_bounds = array<i64: 8, 256>}, {transform_indices = @transform_1, window_bounds = array<i64: 8, 1>}, {transform_indices = @transform_2, window_bounds = array<i64: 8, 1>}, {transform_indices = @transform_3, window_bounds = array<i64: 8, 256>}]} {
    %c0 = arith.constant 0 : index
    %c0_0 = arith.constant 0 : index
    %0 = vector.load %arg1[%c0, %c0_0] : memref<8x256xf32, #tpu.memory_space<vmem>>, vector<8x256xf32>
    %cst = arith.constant dense<0.000000e+00> : vector<8xf32>
    %1 = vector.multi_reduction <add>, %0, %cst [1] : vector<8x256xf32> to vector<8xf32>
    %2 = vector.shape_cast %1 : vector<8xf32> to vector<8x1xf32>
    %cst_1 = arith.constant 3.906250e-03 : f32
    %3 = vector.broadcast %cst_1 : f32 to vector<8x1xf32>
    %4 = arith.mulf %2, %3 : vector<8x1xf32>
    %5 = vector.broadcast %4 : vector<8x1xf32> to vector<8x256xf32>
    %6 = arith.subf %0, %5 : vector<8x256xf32>
    %7 = arith.mulf %6, %6 : vector<8x256xf32>
    %cst_2 = arith.constant dense<0.000000e+00> : vector<8xf32>
    %8 = vector.multi_reduction <add>, %7, %cst_2 [1] : vector<8x256xf32> to vector<8xf32>
    %9 = vector.shape_cast %8 : vector<8xf32> to vector<8x1xf32>
    %cst_3 = arith.constant 3.906250e-03 : f32
    %10 = vector.broadcast %cst_3 : f32 to vector<8x1xf32>
    %11 = arith.mulf %9, %10 : vector<8x1xf32>
    %cst_4 = arith.constant 9.99999974E-6 : f32
    %12 = vector.broadcast %cst_4 : f32 to vector<8x1xf32>
    %13 = arith.addf %11, %12 : vector<8x1xf32>
    %14 = math.rsqrt %13 : vector<8x1xf32>
    %c0_5 = arith.constant 0 : index
    %c0_6 = arith.constant 0 : index
    %15 = vector.load %arg2[%c0_5, %c0_6] : memref<8x1xf32, #tpu.memory_space<vmem>>, vector<8x1xf32>
    %16 = arith.mulf %14, %15 : vector<8x1xf32>
    %c0_7 = arith.constant 0 : index
    %c0_8 = arith.constant 0 : index
    %17 = vector.load %arg3[%c0_7, %c0_8] : memref<8x1xf32, #tpu.memory_space<vmem>>, vector<8x1xf32>
    %18 = arith.mulf %4, %16 : vector<8x1xf32>
    %19 = arith.subf %17, %18 : vector<8x1xf32>
    %20 = vector.broadcast %16 : vector<8x1xf32> to vector<8x256xf32>
    %21 = arith.mulf %0, %20 : vector<8x256xf32>
    %22 = vector.broadcast %19 : vector<8x1xf32> to vector<8x256xf32>
    %23 = arith.addf %21, %22 : vector<8x256xf32>
    %c0_9 = arith.constant 0 : index
    %c0_10 = arith.constant 0 : index
    %24 = vector.load %arg4[%c0_9, %c0_10] : memref<8x256xf32, #tpu.memory_space<vmem>>, vector<8x256xf32>
    tpu.vector_store %arg4[%c0_9, %c0_10], %23 {strides = array<i32>} : memref<8x256xf32, #tpu.memory_space<vmem>>, vector<8x256xf32>,
    return
  }
  func.func @transform_0(%arg0: i32) -> (i32, i32) {
    %c0_i32 = arith.constant 0 : i32
    %c0_i32_0 = arith.constant 0 : i32
    return %arg0, %c0_i32 : i32, i32
  }
  func.func @transform_1(%arg0: i32) -> (i32, i32) {
    %c0_i32 = arith.constant 0 : i32
    %c0_i32_0 = arith.constant 0 : i32
    return %arg0, %c0_i32 : i32, i32
  }
  func.func @transform_2(%arg0: i32) -> (i32, i32) {
    %c0_i32 = arith.constant 0 : i32
    %c0_i32_0 = arith.constant 0 : i32
    return %arg0, %c0_i32 : i32, i32
  }
  func.func @transform_3(%arg0: i32) -> (i32, i32) {
    %c0_i32 = arith.constant 0 : i32
    %c0_i32_0 = arith.constant 0 : i32
    return %arg0, %c0_i32 : i32, i32
  }
}

</mosaic_0001>

<llo_original>
// kernel: tpu_custom_call.1
$region0: #{tpu_custom_call.1}
  #allocation0 [shape = 'u32[]', space=smem, size = 0x4, offset = 0x4, fixed_abs, tag = 'smem constant byte address 0x4 - core index']
  #allocation1 [shape = 'u32[144,128]{1,0:T(1,128)}', space=vmem, size = 0x12000, scoped, tag = 'internal scratch']
  %s0 = inlined_call_operand.vmem [shape: f32[8,256], index: 0, kind: input, shape index: {}]
  %s1 = inlined_call_operand.vmem [shape: f32[8,1], index: 1, kind: input, shape index: {}]
  %s2 = inlined_call_operand.vmem [shape: f32[8,1], index: 2, kind: input, shape index: {}]
  %s3 = inlined_call_operand.hbm [shape: f32[8,256], index: 3, kind: output, shape index: {}]
  %s4 = sld [smem:[#allocation0]]
  $region22: #{tpu_custom_call.1} parent=0
    _
  %s6 = ssub.s32 1, %s4
  %s7 = scalar_select 0, %s6, %s4
  $region1: #{tpu_custom_call.1} parent=0
    #allocation2 [shape = 'u8[8192]{0}', space=vmem, size = 0x2000, scoped, tag = 'output window, operand 0, single buffered']
    #allocation3 [shape = 's32[1]{0}', space=sflag, size = 0x4, scoped, tag = 'scoped memory for tpu_custom_call.1']
    %8 = vsyncpa [#allocation3], 0
    // Predicated region
    $region2: #{tpu_custom_call.1} parent=1 // pred_check
      _
    $region3: #{tpu_custom_call.1} parent=1 // pred_check_branch
      %10 = sbr.rel (0) target = $region5
    $region4: #{tpu_custom_call.1} parent=1 // pred_region
      _
    $region5: #{tpu_custom_call.1} parent=1 // pred_fallthru
      _
    // Predicated region
    $region6: #{tpu_custom_call.1} parent=1 // pred_check
      _
    $region7: #{tpu_custom_call.1} parent=1 // pred_check_branch
      %12 = sbr.rel (0) target = $region9
    $region8: #{tpu_custom_call.1} parent=1 // pred_region
      _
    $region9: #{tpu_custom_call.1} parent=1 // pred_fallthru
      _
    // Predicated region
    $region10: #{tpu_custom_call.1} parent=1 // pred_check
      _
    $region11: #{tpu_custom_call.1} parent=1 // pred_check_branch
      %14 = sbr.rel (0) target = $region13
    $region12: #{tpu_custom_call.1} parent=1 // pred_region
      _
    $region13: #{tpu_custom_call.1} parent=1 // pred_fallthru
      _
    %v15 = vld [vmem:[%s0] sm:$0xff]
    %v16 = vld [vmem:[%s0 + $0x8] sm:$0xff]
    %v17 = vadd.f32 %v15, %v16
    %18 = vadd.xlane.f32.xlu0 %v17
    %v19 = vpop.xlane.xlu0 %18
    %v20 = vmul.f32 %v19, 0.00390625
    %v21 = vsub.f32 %v15, %v20
    %v22 = vsub.f32 %v16, %v20
    %v23 = vmul.f32 %v21, %v21
    %v24 = vmul.f32 %v22, %v22
    %v25 = vadd.f32 %v23, %v24
    %26 = vadd.xlane.f32.xlu0 %v25
    %v27 = vpop.xlane.xlu0 %26
    %v28 = vmul.f32 %v27, 0.00390625
    %v29 = vadd.f32 %v28, 1e-05
    %v30 = vrsqrt.pop %v29
    %v31 = vld [vmem:[%s1] sm:$0xff]
    %v32 = vmul.f32 %v30, %v31
    %v33 = vld [vmem:[%s2] sm:$0xff]
    %v34 = vmul.f32 %v20, %v32
    %v35 = vsub.f32 %v33, %v34
    %37 = vset.pattern.permute.xlu0 0
    %38 = vperm.xlu0 %37, %v32
    %v39 = vpop.permute.xlu0 %38
    %v41 = vmul.f32 %v15, %v39
    %v42 = vmul.f32 %v16, %v39
    %44 = vset.pattern.permute.xlu0 0
    %45 = vperm.xlu0 %44, %v35
    %v46 = vpop.permute.xlu0 %45
    %v48 = vadd.f32 %v41, %v46
    %v49 = vadd.f32 %v42, %v46
    %50 = vst [vmem:[#allocation2] sm:$0xff] %v48
    %51 = vst [vmem:[#allocation2 + $0x8] sm:$0xff] %v49
    // Predicated region
    $region14: #{tpu_custom_call.1} parent=1 // pred_check
      _
    $region15: #{tpu_custom_call.1} parent=1 // pred_check_branch
      %53 = sbr.rel (0) target = $region17
    $region16: #{tpu_custom_call.1} parent=1 // pred_region
      %s55 = ssub.s32 256, 256
      %56 = vsyncadd [#allocation3], %s55
      %s58 = sshll.u32 [#allocation2], 4
      %s59 = int_to_ptr.vmem [resolvable:$true] %s58
      %61 = dma.vmem_to_hbm [thread:$0]  %s59, 256, %s3, [#allocation3]
    $region17: #{tpu_custom_call.1} parent=1 // pred_fallthru
      _
    // Predicated region
    $region18: #{tpu_custom_call.1} parent=1 // pred_check
      _
    $region19: #{tpu_custom_call.1} parent=1 // pred_check_branch
      %63 = sbr.rel (0) target = $region21
    $region20: #{tpu_custom_call.1} parent=1 // pred_region
      %64 = dma.done [#allocation3], 256
    $region21: #{tpu_custom_call.1} parent=1 // pred_fallthru
      _
    %65 = vsyncpa [#allocation3], 1

</llo_original>
